<compile_context>
chip_gen: v7x
topology: tpu7x:2x2x1
jax: 0.10.0
libtpu: 0.0.40
codegen_flags: <defaults>
</compile_context>

<pallas_src>
import jax
import jax.numpy as jnp
from jax.experimental import pallas as pl
from jax.experimental.pallas import tpu as pltpu


def linear_kernel(w_ref, b_ref, x_ref, o_ref):
    # w_ref: (1, 1) f32 in SMEM, b_ref: (1,) f32 in SMEM, x_ref/o_ref: (N, 1) VMEM.
    w = w_ref[0, 0]                      # scalar read from SMEM
    b = b_ref[0]                         # scalar read from SMEM
    # VPU fused multiply-add with scalar broadcast; equivalent to x @ W^T + b
    # for in_features == out_features == 1.
    o_ref[...] = x_ref[...] * w + b


def linear_forward(x, weight, bias):
    """Pallas implementation of nn.Linear(1, 1) forward: y = x * w + b."""
    n, in_f = x.shape
    out_f = weight.shape[0]
    assert in_f == 1 and out_f == 1, "kernel specialized to nn.Linear(1, 1)"
    # TODO(synk): an op this small is launch-overhead bound; in a real model
    # this affine would be fused into an adjacent kernel or left to XLA.
    return pl.pallas_call(
        linear_kernel,
        out_shape=jax.ShapeDtypeStruct((n, out_f), x.dtype),
        in_specs=[
            pl.BlockSpec(memory_space=pltpu.MemorySpace.SMEM),  # weight (1, 1)
            pl.BlockSpec(memory_space=pltpu.MemorySpace.SMEM),  # bias   (1,)
            pl.BlockSpec(memory_space=pltpu.MemorySpace.VMEM),  # x      (n, 1)
        ],
        out_specs=pl.BlockSpec(memory_space=pltpu.MemorySpace.VMEM),
    )(weight, bias, x)


if __name__ == "__main__":
    key = jax.random.PRNGKey(0)
    kx, kw, kb = jax.random.split(key, 3)

    # Small shapes consistent with nn.Linear(1, 1): batch=8, in=1, out=1.
    x = jax.random.normal(kx, (8, 1), dtype=jnp.float32)
    weight = jax.random.normal(kw, (1, 1), dtype=jnp.float32)  # (out_f, in_f)
    bias = jax.random.normal(kb, (1,), dtype=jnp.float32)      # (out_f,)

    y = linear_forward(x, weight, bias)
    y = jax.block_until_ready(y)

    # Pure-JAX reference check.
    y_ref = x @ weight.T + bias
    assert y.shape == (8, 1)
    assert jnp.allclose(y, y_ref, atol=1e-5, rtol=1e-5)

    print("KERNEL_OK")
</pallas_src>

<mosaic_0001>
module attributes {stable_mosaic.version = 11 : i64} {
  func.func @linear_kernel(%arg0: memref<1x1xf32, #tpu.memory_space<smem>>, %arg1: memref<1xf32, #tpu.memory_space<smem>>, %arg2: memref<8x1xf32, #tpu.memory_space<vmem>>, %arg3: memref<8x1xf32, #tpu.memory_space<vmem>>) attributes {dimension_semantics = [], scalar_prefetch = 0 : i64, scratch_operands = 0 : i64, tpu.core_type = #tpu.core_type<tc>} {
    %c0 = arith.constant 0 : index
    %c0_0 = arith.constant 0 : index
    %0 = memref.load %arg0[%c0, %c0_0] : memref<1x1xf32, #tpu.memory_space<smem>>
    %c0_1 = arith.constant 0 : index
    %1 = memref.load %arg1[%c0_1] : memref<1xf32, #tpu.memory_space<smem>>
    %c0_2 = arith.constant 0 : index
    %c0_3 = arith.constant 0 : index
    %2 = vector.load %arg2[%c0_2, %c0_3] : memref<8x1xf32, #tpu.memory_space<vmem>>, vector<8x1xf32>
    %3 = vector.broadcast %0 : f32 to vector<8x1xf32>
    %4 = arith.mulf %2, %3 : vector<8x1xf32>
    %5 = vector.broadcast %1 : f32 to vector<8x1xf32>
    %6 = arith.addf %4, %5 : vector<8x1xf32>
    %c0_4 = arith.constant 0 : index
    %c0_5 = arith.constant 0 : index
    %7 = vector.load %arg3[%c0_4, %c0_5] : memref<8x1xf32, #tpu.memory_space<vmem>>, vector<8x1xf32>
    tpu.vector_store %arg3[%c0_4, %c0_5], %6 {strides = array<i32>} : memref<8x1xf32, #tpu.memory_space<vmem>>, vector<8x1xf32>,
    return
  }
}

</mosaic_0001>

<llo_original>
// kernel: tpu_custom_call.1
$region0: #{tpu_custom_call.1}
  #allocation0 [shape = 'u32[]', space=smem, size = 0x4, offset = 0x4, fixed_abs, tag = 'smem constant byte address 0x4 - core index']
  #allocation1 [shape = 'u32[144,128]{1,0:T(1,128)}', space=vmem, size = 0x12000, scoped, tag = 'internal scratch']
  #allocation2 [shape = 'f32[1,1]{1,0:T(1,128)S(6)}', space=smem, size = 0x200, scoped, tag = 'scoped memory for tpu_custom_call.1']
  #allocation3 [shape = 'f32[1]{0:T(128)S(6)}', space=smem, size = 0x200, scoped, tag = 'scoped memory for tpu_custom_call.1']
  %s0 = inlined_call_operand.<no memory space> [shape: f32[1,1], index: 0, kind: input, shape index: {}]
  %s1 = inlined_call_operand.<no memory space> [shape: f32[1], index: 1, kind: input, shape index: {}]
  %s2 = inlined_call_operand.vmem [shape: f32[8,1], index: 2, kind: input, shape index: {}]
  %s3 = inlined_call_operand.vmem [shape: f32[8,1], index: 3, kind: output, shape index: {}]
  %s4 = sld [smem:[#allocation0]]
  $region22: #{tpu_custom_call.1} parent=0
    _
  %s6 = ssub.s32 1, %s4
  %s7 = scalar_select 0, %s6, %s4
  %8 = sst [smem:[#allocation2]] %s0
  %9 = sst [smem:[#allocation3]] %s1
  // Predicated region
  $region2: #{tpu_custom_call.1} parent=0 // pred_check
    _
  $region3: #{tpu_custom_call.1} parent=0 // pred_check_branch
    %11 = sbr.rel (0) target = $region5
  $region4: #{tpu_custom_call.1} parent=0 // pred_region
    _
  $region5: #{tpu_custom_call.1} parent=0 // pred_fallthru
    _
  // Predicated region
  $region6: #{tpu_custom_call.1} parent=0 // pred_check
    _
  $region7: #{tpu_custom_call.1} parent=0 // pred_check_branch
    %13 = sbr.rel (0) target = $region9
  $region8: #{tpu_custom_call.1} parent=0 // pred_region
    _
  $region9: #{tpu_custom_call.1} parent=0 // pred_fallthru
    _
  // Predicated region
  $region10: #{tpu_custom_call.1} parent=0 // pred_check
    _
  $region11: #{tpu_custom_call.1} parent=0 // pred_check_branch
    %15 = sbr.rel (0) target = $region13
  $region12: #{tpu_custom_call.1} parent=0 // pred_region
    _
  $region13: #{tpu_custom_call.1} parent=0 // pred_fallthru
    _
  %s16 = sld [smem:[#allocation2]]
  %s17 = sld [smem:[#allocation3]]
  %v18 = vld [vmem:[%s2] sm:$0xff]
  %v19 = vstv %s16
  %v20 = vmul.f32 %v18, %v19
  %v21 = vstv %s17
  %v22 = vadd.f32 %v20, %v21
  %vm23 = vcmask 7168
  %24 = vst.msk [vmem:[%s3] sm:$0xff] %vm23, %v22
  // Predicated region
  $region14: #{tpu_custom_call.1} parent=0 // pred_check
    _
  $region15: #{tpu_custom_call.1} parent=0 // pred_check_branch
    %26 = sbr.rel (0) target = $region17
  $region16: #{tpu_custom_call.1} parent=0 // pred_region
    _
  $region17: #{tpu_custom_call.1} parent=0 // pred_fallthru
    _
  // Predicated region
  $region18: #{tpu_custom_call.1} parent=0 // pred_check
    _
  $region19: #{tpu_custom_call.1} parent=0 // pred_check_branch
    %28 = sbr.rel (0) target = $region21
  $region20: #{tpu_custom_call.1} parent=0 // pred_region
    _
  $region21: #{tpu_custom_call.1} parent=0 // pred_fallthru
    _

</llo_original>
